<compile_context>
chip_gen: v6e
topology: v6e:2x2x1
jax: 0.10.0
libtpu: 0.0.40
codegen_flags: <defaults>
</compile_context>

<pallas_src>
import jax
import jax.numpy as jnp
from jax import lax
from jax.experimental import pallas as pl
from jax.experimental.pallas import tpu as pltpu

_LANES = 128
_SUBLANES = 8
_MAX_ROW_TILE = 1024   # (1024,128) f32 = 512 KiB per input per pipeline buffer (~2 MiB total)
_NUM_SPLITS = 2        # leading "parallel" axis: both TCs on v7x, harmless on 1-TC chips


def _make_kernel(row_tile, rows, steps_per_split, needs_row_mask):
    def kernel(pred_ref, targ_ref, out_ref, acc_ref):
        i = pl.program_id(1)  # reduction-step axis ("arbitrary")

        @pl.when(i == 0)
        def _():
            acc_ref[...] = jnp.zeros_like(acc_ref)

        x = pred_ref[...].astype(jnp.float32)
        t_raw = targ_ref[...].astype(jnp.float32)

        # torch.nonzero selection on the ORIGINAL target values.
        mask = t_raw != 0.0
        if needs_row_mask:
            # Mask rows past the real data (ragged trailing block / clamped block index).
            gstep = pl.program_id(0) * steps_per_split + i
            row_ids = gstep * row_tile + lax.broadcasted_iota(
                jnp.int32, (row_tile, _LANES), 0)
            mask = jnp.logical_and(mask, row_ids < rows)

        # Stable BCEWithLogits(x, t) with t = t_raw/8 + 0.5:
        #   max(x,0) - x*t + log1p(exp(-|x|)) == 0.5*|x| - 0.125*x*t_raw + log1p(exp(-|x|))
        abs_x = jnp.abs(x)
        loss = 0.5 * abs_x - 0.125 * (x * t_raw) + jnp.log1p(jnp.exp(-abs_x))
        loss = jnp.where(mask, loss, 0.0)

        # Vector partial sums: pure elementwise vreg adds into the (8,128) accumulator.
        if row_tile % _SUBLANES == 0:
            acc_ref[...] += loss.reshape(
                row_tile // _SUBLANES, _SUBLANES, _LANES).sum(axis=0)
        else:  # tiny ragged inputs where the block equals the full (rows,128) array
            acc_ref[0:1, :] = acc_ref[0:1, :] + loss.sum(axis=0, keepdims=True)

        @pl.when(i == pl.num_programs(1) - 1)
        def _():
            out_ref[...] = acc_ref[...]   # lane-dense (8,128) store; final reduce in wrapper

    return kernel


@jax.jit
def centerloss(pred_map, target_map):
    """Pallas TPU forward pass of `centerloss`.

    Returns a float32 scalar equal to
    F.binary_cross_entropy_with_logits(pred[idx], (target/8+0.5)[idx], 'none').sum()
    with idx = nonzero(target.flatten()).
    """
    pred = jnp.ravel(pred_map)
    targ = jnp.ravel(target_map)

    n = pred.shape[0]
    pad = (-n) % _LANES
    if pad:
        # Pad target with exactly 0 so padded positions are excluded by the value mask.
        pred = jnp.pad(pred, (0, pad))
        targ = jnp.pad(targ, (0, pad))
    rows = (n + pad) // _LANES

    pred2d = pred.reshape(rows, _LANES)
    targ2d = targ.reshape(rows, _LANES)

    row_tile = min(_MAX_ROW_TILE, rows)
    steps = pl.cdiv(rows, row_tile)
    num_splits = _NUM_SPLITS if steps >= _NUM_SPLITS else 1
    spc = pl.cdiv(steps, num_splits)               # grid steps per split
    needs_row_mask = (num_splits * spc * row_tile) != rows
    last_block = steps - 1

    if num_splits * spc == steps:
        in_map = lambda c, i: (c * spc + i, 0)
    else:
        # Clamp fully out-of-range block indices; their contribution is masked in-kernel.
        in_map = lambda c, i: (jnp.minimum(c * spc + i, last_block), 0)

    kernel = _make_kernel(row_tile, rows, spc, needs_row_mask)

    partials = pl.pallas_call(
        kernel,
        out_shape=jax.ShapeDtypeStruct((num_splits * _SUBLANES, _LANES), jnp.float32),
        grid_spec=pltpu.PrefetchScalarGridSpec(
            num_scalar_prefetch=0,
            grid=(num_splits, spc),
            in_specs=[
                pl.BlockSpec((row_tile, _LANES), in_map),
                pl.BlockSpec((row_tile, _LANES), in_map),
            ],
            out_specs=pl.BlockSpec((_SUBLANES, _LANES), lambda c, i: (c, 0)),
            scratch_shapes=[pltpu.VMEM((_SUBLANES, _LANES), jnp.float32)],
        ),
        compiler_params=pltpu.CompilerParams(
            dimension_semantics=("parallel", "arbitrary"),
        ),
    )(pred2d, targ2d)

    return jnp.sum(partials)


def _reference(pred_map, target_map):
    p = jnp.ravel(pred_map).astype(jnp.float32)
    t_raw = jnp.ravel(target_map).astype(jnp.float32)
    mask = t_raw != 0.0
    t = t_raw / 8.0 + 0.5
    loss = jnp.maximum(p, 0.0) - p * t + jnp.log1p(jnp.exp(-jnp.abs(p)))
    return jnp.sum(jnp.where(mask, loss, 0.0))


if __name__ == "__main__":
    key = jax.random.PRNGKey(0)
    k1, k2, k3 = jax.random.split(key, 3)

    # NCHW-shaped synthetic inputs (batch=2, channels=4, spatial=16x16).
    shape = (2, 4, 16, 16)
    pred_map = jax.random.normal(k1, shape, dtype=jnp.float32)

    # Target values in [-4, 4] (so target/8 + 0.5 lands in [0, 1]),
    # with ~half the entries exactly zero (excluded by the nonzero mask).
    targ_vals = jax.random.uniform(k2, shape, minval=-4.0, maxval=4.0)
    zero_mask = jax.random.bernoulli(k3, p=0.5, shape=shape)
    target_map = jnp.where(zero_mask, 0.0, targ_vals).astype(jnp.float32)

    out = centerloss(pred_map, target_map)
    jax.block_until_ready(out)

    ref = _reference(pred_map, target_map)
    assert jnp.allclose(out, ref, rtol=1e-5, atol=1e-5), (out, ref)

    print("KERNEL_OK")
</pallas_src>

<mosaic_0001>
module attributes {stable_mosaic.version = 11 : i64} {
  func.func @kernel(%arg0: i32, %arg1: i32, %arg2: memref<16x128xf32, #tpu.memory_space<vmem>>, %arg3: memref<16x128xf32, #tpu.memory_space<vmem>>, %arg4: memref<8x128xf32, #tpu.memory_space<vmem>>, %arg5: memref<8x128xf32, #tpu.memory_space<vmem>>) attributes {dimension_semantics = [#tpu.dimension_semantics<parallel>, #tpu.dimension_semantics<arbitrary>], iteration_bounds = array<i64: 1, 1>, scalar_prefetch = 0 : i64, scratch_operands = 1 : i64, tpu.core_type = #tpu.core_type<tc>, window_params = [{transform_indices = @transform_0, window_bounds = array<i64: 16, 128>}, {transform_indices = @transform_1, window_bounds = array<i64: 16, 128>}, {transform_indices = @transform_2, window_bounds = array<i64: 8, 128>}]} {
    %c0_i32 = arith.constant 0 : i32
    %0 = arith.cmpi eq, %arg1, %c0_i32 : i32
    %1 = arith.extui %0 : i1 to i32
    %c0_i32_0 = arith.constant 0 : i32
    %2 = arith.cmpi ne, %1, %c0_i32_0 : i32
    scf.if %2 {
      %cst_15 = arith.constant 0.000000e+00 : f32
      %29 = vector.broadcast %cst_15 : f32 to vector<8x128xf32>
      %c0_16 = arith.constant 0 : index
      %c0_17 = arith.constant 0 : index
      %30 = vector.load %arg5[%c0_16, %c0_17] : memref<8x128xf32, #tpu.memory_space<vmem>>, vector<8x128xf32>
      tpu.vector_store %arg5[%c0_16, %c0_17], %29 {strides = array<i32>} : memref<8x128xf32, #tpu.memory_space<vmem>>, vector<8x128xf32>,
    } else {
    }
    %c0 = arith.constant 0 : index
    %c0_1 = arith.constant 0 : index
    %3 = vector.load %arg2[%c0, %c0_1] : memref<16x128xf32, #tpu.memory_space<vmem>>, vector<16x128xf32>
    %c0_2 = arith.constant 0 : index
    %c0_3 = arith.constant 0 : index
    %4 = vector.load %arg3[%c0_2, %c0_3] : memref<16x128xf32, #tpu.memory_space<vmem>>, vector<16x128xf32>
    %cst = arith.constant 0.000000e+00 : f32
    %5 = vector.broadcast %cst : f32 to vector<16x128xf32>
    %6 = arith.cmpf one, %4, %5 : vector<16x128xf32>
    %7 = math.absf %3 : vector<16x128xf32>
    %cst_4 = arith.constant 5.000000e-01 : f32
    %8 = vector.broadcast %cst_4 : f32 to vector<16x128xf32>
    %9 = arith.mulf %8, %7 : vector<16x128xf32>
    %10 = arith.mulf %3, %4 : vector<16x128xf32>
    %cst_5 = arith.constant 1.250000e-01 : f32
    %11 = vector.broadcast %cst_5 : f32 to vector<16x128xf32>
    %12 = arith.mulf %11, %10 : vector<16x128xf32>
    %13 = arith.subf %9, %12 : vector<16x128xf32>
    %cst_6 = arith.constant 0.000000e+00 : f32
    %14 = vector.broadcast %cst_6 : f32 to vector<16x128xf32>
    %15 = arith.subf %14, %7 : vector<16x128xf32>
    %16 = math.exp %15 : vector<16x128xf32>
    %17 = math.log1p %16 : vector<16x128xf32>
    %18 = arith.addf %13, %17 : vector<16x128xf32>
    %cst_7 = arith.constant 0.000000e+00 : f32
    %19 = vector.broadcast %cst_7 : f32 to vector<16x128xf32>
    %20 = arith.select %6, %18, %19 : vector<16x128xi1>, vector<16x128xf32>
    %c0_8 = arith.constant 0 : index
    %c0_9 = arith.constant 0 : index
    %21 = vector.load %arg5[%c0_8, %c0_9] : memref<8x128xf32, #tpu.memory_space<vmem>>, vector<8x128xf32>
    %22 = vector.shape_cast %20 : vector<16x128xf32> to vector<2x8x128xf32>
    %cst_10 = arith.constant dense<0.000000e+00> : vector<8x128xf32>
    %23 = vector.multi_reduction <add>, %22, %cst_10 [0] : vector<2x8x128xf32> to vector<8x128xf32>
    %24 = arith.addf %21, %23 : vector<8x128xf32>
    %c0_11 = arith.constant 0 : index
    %c0_12 = arith.constant 0 : index
    %25 = vector.load %arg5[%c0_11, %c0_12] : memref<8x128xf32, #tpu.memory_space<vmem>>, vector<8x128xf32>
    tpu.vector_store %arg5[%c0_11, %c0_12], %24 {strides = array<i32>} : memref<8x128xf32, #tpu.memory_space<vmem>>, vector<8x128xf32>,
    %c0_i32_13 = arith.constant 0 : i32
    %26 = arith.cmpi eq, %arg1, %c0_i32_13 : i32
    %27 = arith.extui %26 : i1 to i32
    %c0_i32_14 = arith.constant 0 : i32
    %28 = arith.cmpi ne, %27, %c0_i32_14 : i32
    scf.if %28 {
      %c0_15 = arith.constant 0 : index
      %c0_16 = arith.constant 0 : index
      %29 = vector.load %arg5[%c0_15, %c0_16] : memref<8x128xf32, #tpu.memory_space<vmem>>, vector<8x128xf32>
      %c0_17 = arith.constant 0 : index
      %c0_18 = arith.constant 0 : index
      %30 = vector.load %arg4[%c0_17, %c0_18] : memref<8x128xf32, #tpu.memory_space<vmem>>, vector<8x128xf32>
      tpu.vector_store %arg4[%c0_17, %c0_18], %29 {strides = array<i32>} : memref<8x128xf32, #tpu.memory_space<vmem>>, vector<8x128xf32>,
    } else {
    }
    return
  }
  func.func @transform_0(%arg0: i32, %arg1: i32) -> (i32, i32) {
    %c1_i32 = arith.constant 1 : i32
    %0 = arith.muli %arg0, %c1_i32 : i32
    %1 = arith.addi %0, %arg1 : i32
    %c0_i32 = arith.constant 0 : i32
    %c0_i32_0 = arith.constant 0 : i32
    return %1, %c0_i32 : i32, i32
  }
  func.func @transform_1(%arg0: i32, %arg1: i32) -> (i32, i32) {
    %c1_i32 = arith.constant 1 : i32
    %0 = arith.muli %arg0, %c1_i32 : i32
    %1 = arith.addi %0, %arg1 : i32
    %c0_i32 = arith.constant 0 : i32
    %c0_i32_0 = arith.constant 0 : i32
    return %1, %c0_i32 : i32, i32
  }
  func.func @transform_2(%arg0: i32, %arg1: i32) -> (i32, i32) {
    %c0_i32 = arith.constant 0 : i32
    %c0_i32_0 = arith.constant 0 : i32
    return %arg0, %c0_i32 : i32, i32
  }
}

</mosaic_0001>

<llo_original>
// kernel: centerloss.1
$region0: #{centerloss.1}
  #allocation0 [shape = 'u32[]', space=smem, size = 0x4, offset = 0x4, fixed_abs, tag = 'smem constant byte address 0x4 - core index']
  #allocation1 [shape = 'u32[144,128]{1,0:T(1,128)}', space=vmem, size = 0x12000, scoped, tag = 'internal scratch']
  #allocation2 [shape = 'f32[8,128]{1,0:T(8,128)}', space=vmem, size = 0x1000, scoped, tag = 'scratch operand']
  %s0 = inlined_call_operand.vmem [shape: f32[16,128], index: 0, kind: input, shape index: {}]
  %s1 = inlined_call_operand.vmem [shape: f32[16,128], index: 1, kind: input, shape index: {}]
  %s2 = inlined_call_operand.vmem [shape: f32[8,128], index: 2, kind: output, shape index: {}]
  %s3 = sld [smem:[#allocation0]]
  $region26: #{centerloss.1} parent=0
    _
  %s5 = ssub.s32 1, %s3
  %s6 = scalar_select 0, %s5, %s3
  // Predicated region
  $region2: #{centerloss.1} parent=0 // pred_check
    _
  $region3: #{centerloss.1} parent=0 // pred_check_branch
    %8 = sbr.rel (0) target = $region5
  $region4: #{centerloss.1} parent=0 // pred_region
    %s9 = sadd.s32 0, 0
    %s10 = smul.u32 2, %s9
    %p11 = scmp.lt.s32.totalorder %s10, 1
    %s12 = scalar_select %p11, %s10, 1
    %s13 = smul.addr %s12, 8
    %s14 = scalar_lea.vmem %s0, %s13
    %s15 = sadd.s32 0, 0
    %s16 = smul.u32 2, %s15
  $region5: #{centerloss.1} parent=0 // pred_fallthru
    _
  // Predicated region
  $region6: #{centerloss.1} parent=0 // pred_check
    _
  $region7: #{centerloss.1} parent=0 // pred_check_branch
    %18 = sbr.rel (0) target = $region9
  $region8: #{centerloss.1} parent=0 // pred_region
    %s19 = sadd.s32 0, 0
    %s20 = smul.u32 2, %s19
    %p21 = scmp.lt.s32.totalorder %s20, 1
    %s22 = scalar_select %p21, %s20, 1
    %s23 = smul.addr %s22, 8
    %s24 = scalar_lea.vmem %s1, %s23
    %s25 = sadd.s32 0, 0
    %s26 = smul.u32 2, %s25
  $region9: #{centerloss.1} parent=0 // pred_fallthru
    _
  %s27 = sadd.s32 0, 0
  %s28 = smul.u32 2, %s27
  %p29 = scmp.lt.s32.totalorder %s28, 1
  %s30 = scalar_select %p29, %s28, 1
  %s31 = smul.addr %s30, 8
  %s32 = scalar_lea.vmem %s0, %s31
  %s33 = sadd.s32 0, 0
  %s34 = smul.u32 2, %s33
  %p35 = scmp.lt.s32.totalorder %s34, 1
  %s36 = scalar_select %p35, %s34, 1
  %s37 = smul.addr %s36, 8
  %s38 = scalar_lea.vmem %s1, %s37
  %s39 = sadd.s32 0, 0
  %s40 = smul.u32 2, %s39
  %p41 = scmp.lt.s32.totalorder %s40, 1
  %s42 = scalar_select %p41, %s40, 1
  %s43 = smul.addr %s42, 8
  %s44 = scalar_lea.vmem %s0, %s43
  %s45 = sadd.s32 0, 0
  %s46 = smul.u32 2, %s45
  %s47 = sadd.s32 0, 0
  %s48 = smul.u32 2, %s47
  %p49 = scmp.lt.s32.totalorder %s48, 1
  %s50 = scalar_select %p49, %s48, 1
  %s51 = smul.addr %s50, 8
  %s52 = scalar_lea.vmem %s1, %s51
  %s53 = sadd.s32 0, 0
  %s54 = smul.u32 2, %s53
  %p55 = scmp.eq.s32.totalorder 0, 0
  // Predicated region
  $region10: #{centerloss.1} parent=0 // pred_check
    %p56 = pneg %p55
  $region11: #{centerloss.1} parent=0 // pred_check_branch
    %58 = sbr.rel (%p56) target = $region13
  $region12: #{centerloss.1} parent=0 // pred_region
    %59 = vst [vmem:[#allocation2] sm:$0xff] 0.0
  $region13: #{centerloss.1} parent=0 // pred_fallthru
    _
  %v60 = vld [vmem:[%s44] sm:$0xff]
  %v61 = vld [vmem:[%s44 + $0x8] sm:$0xff]
  %v62 = vld [vmem:[%s52] sm:$0xff]
  %v63 = vld [vmem:[%s52 + $0x8] sm:$0xff]
  %vm64 = vcmp.ne.f32.partialorder %v62, 0.0
  %vm65 = vcmp.ne.f32.partialorder %v63, 0.0
  %v66 = vand.u32 2147483647, %v60
  %v67 = vand.u32 2147483647, %v61
  %v68 = vmul.f32 %v66, 0.5
  %v69 = vmul.f32 %v67, 0.5
  %v70 = vmul.f32 %v60, %v62
  %v71 = vmul.f32 %v61, %v63
  %v72 = vmul.f32 %v70, 0.125
  %v73 = vmul.f32 %v71, 0.125
  %v74 = vsub.f32 %v68, %v72
  %v75 = vsub.f32 %v69, %v73
  %v76 = vsub.f32 0.0, %v66
  %v77 = vsub.f32 0.0, %v67
  %v78 = vmul.f32 %v76, 1.442695
  %v79 = vpow.pop %v78
  %v80 = vmul.f32 %v77, 1.442695
  %v81 = vpow.pop %v80
  %v82 = vadd.f32 %v79, 1.0
  %v83 = vlog2.pop %v82
  %v84 = vmul.f32 %v83, 0.6931472
  %v85 = vmul.f32 -0.5, %v79
  %v86 = vadd.f32 %v85, 1.0
  %v87 = vmul.f32 %v86, %v79
  %v88 = vand.u32 2147483647, %v79
  %vm89 = vcmp.lt.f32.partialorder %v88, 0.0004427343
  %v90 = vsel %vm89, %v87, %v84
  %v91 = vadd.f32 %v81, 1.0
  %v92 = vlog2.pop %v91
  %v93 = vmul.f32 %v92, 0.6931472
  %v94 = vmul.f32 -0.5, %v81
  %v95 = vadd.f32 %v94, 1.0
  %v96 = vmul.f32 %v95, %v81
  %v97 = vand.u32 2147483647, %v81
  %vm98 = vcmp.lt.f32.partialorder %v97, 0.0004427343
  %v99 = vsel %vm98, %v96, %v93
  %v100 = vadd.f32 %v74, %v90
  %v101 = vadd.f32 %v75, %v99
  %v102 = vsel %vm64, %v100, 0.0
  %v103 = vsel %vm65, %v101, 0.0
  %v104 = vld [vmem:[#allocation2] sm:$0xff]
  %v105 = vadd.f32 %v102, %v103
  %v106 = vadd.f32 %v104, %v105
  %107 = vst [vmem:[#allocation2] sm:$0xff] %v106
  // Predicated region
  $region14: #{centerloss.1} parent=0 // pred_check
    %p108 = pneg %p55
  $region15: #{centerloss.1} parent=0 // pred_check_branch
    %110 = sbr.rel (%p108) target = $region17
  $region16: #{centerloss.1} parent=0 // pred_region
    %v111 = vld [vmem:[#allocation2] sm:$0xff]
    %112 = vst [vmem:[%s2] sm:$0xff] %v111
  $region17: #{centerloss.1} parent=0 // pred_fallthru
    _
  // Predicated region
  $region18: #{centerloss.1} parent=0 // pred_check
    _
  $region19: #{centerloss.1} parent=0 // pred_check_branch
    %114 = sbr.rel (0) target = $region21
  $region20: #{centerloss.1} parent=0 // pred_region
    _
  $region21: #{centerloss.1} parent=0 // pred_fallthru
    _
  // Predicated region
  $region22: #{centerloss.1} parent=0 // pred_check
    _
  $region23: #{centerloss.1} parent=0 // pred_check_branch
    %116 = sbr.rel (0) target = $region25
  $region24: #{centerloss.1} parent=0 // pred_region
    _
  $region25: #{centerloss.1} parent=0 // pred_fallthru
    _

</llo_original>
